<compile_context>
chip_gen: v7x
topology: tpu7x:2x2x1
jax: 0.10.0
libtpu: 0.0.40
codegen_flags: <defaults>
</compile_context>

<pallas_src>
import functools

import jax
import jax.numpy as jnp
from jax.experimental import pallas as pl
from jax.experimental.pallas import tpu as pltpu  # noqa: F401  (TPU backend)

LANE = 128
SUBLANE_F32 = 8


def _round_up(n, m):
    return ((n + m - 1) // m) * m


def _full_spec(shape):
    # whole-array block resident in VMEM (shapes are small/padded); no grid.
    return pl.BlockSpec(shape, lambda: (0,) * len(shape))


def _has_bf16_vpu():
    # v6e/v7x have a bf16 VPU; v5e and earlier do not -> keep f32 epilogue.
    try:
        kind = jax.devices()[0].device_kind.lower()
    except Exception:
        return False
    return ("v6" in kind) or ("v7" in kind)


# ----------------------------------------------------------------------------
# Fused Pallas kernel: all SAGEConv layers + relu + masked log_softmax
# ----------------------------------------------------------------------------
def _fused_sage_kernel(*refs, num_layers: int, out_channels: int,
                       tgt_rows: tuple, bf16_epilogue: bool):
    # refs = (x, [adj, inv_deg, w_packed, b] * num_layers, out)
    x_ref = refs[0]
    o_ref = refs[-1]
    layer_refs = refs[1:-1]

    h = x_ref[...]  # bf16 [n_src0_pad, c0_pad]   (all dims lane/sublane padded)
    logits = None
    for i in range(num_layers):
        a_ref, inv_deg_ref, w_ref, b_ref = layer_refs[4 * i:4 * i + 4]
        n_tgt = tgt_rows[i]

        # mean aggregation:  (A @ h) * inv_deg   — bf16 MXU, f32 accumulation,
        # inv_deg precomputed in the glue (no divide/select on the VALU).
        agg = jnp.dot(a_ref[...], h, preferred_element_type=jnp.float32)
        agg = agg * inv_deg_ref[...]                       # f32 [n_tgt, 1] bcast

        # packed SAGEConv projection:  [agg | x_target] @ [W_l ; W_r] + b
        # (single MXU pass, double contraction depth; both halves are 128-lane
        #  aligned so the concat is a cheap lane-block shuffle).
        z = jnp.concatenate([agg.astype(jnp.bfloat16), h[:n_tgt, :]], axis=1)
        out = jnp.dot(z, w_ref[...], preferred_element_type=jnp.float32) + b_ref[...]

        if i != num_layers - 1:
            if bf16_epilogue:                       # bf16 VPU (v6e/v7x)
                h = jnp.maximum(out.astype(jnp.bfloat16), 0.0)
            else:                                   # v5e: f32 VPU only
                h = jnp.maximum(out, 0.0).astype(jnp.bfloat16)
        else:
            logits = out                            # f32 [n_tgt_last_pad, C_pad]

    # masked log_softmax over the lane-padded output channels; the -1e30 mask
    # makes exp() underflow to exactly 0 in padded columns (no extra select).
    col = jax.lax.broadcasted_iota(jnp.int32, logits.shape, 1)
    masked = jnp.where(col < out_channels, logits, -1e30)
    m = jnp.max(masked, axis=-1, keepdims=True)
    s = masked - m
    e = jnp.exp(s)
    lse = jnp.log(jnp.sum(e, axis=-1, keepdims=True))
    o_ref[...] = s - lse                            # padded cols sliced off outside


def sage_forward_fused(x_pad_bf16, layers, out_channels, bf16_epilogue):
    """layers: list of (adj bf16 [n_tgt_pad, n_src_pad], inv_deg f32 [n_tgt_pad,1],
                        w_packed bf16 [2*c_in_pad, c_out_pad], b f32 [1, c_out_pad])."""
    num_layers = len(layers)
    n_last = layers[-1][0].shape[0]
    c_pad = layers[-1][2].shape[1]
    tgt_rows = tuple(a.shape[0] for (a, _, _, _) in layers)

    operands = [x_pad_bf16]
    in_specs = [_full_spec(x_pad_bf16.shape)]
    for layer_ops in layers:
        for t in layer_ops:
            operands.append(t)
            in_specs.append(_full_spec(t.shape))

    # advisory cost estimate for the XLA scheduler
    flops = 0
    bytes_accessed = x_pad_bf16.size * x_pad_bf16.dtype.itemsize
    for (a, inv_deg, w, b) in layers:
        n_tgt, n_src = a.shape
        k2, c_out = w.shape
        flops += 2 * (n_tgt * n_src * (k2 // 2) + n_tgt * k2 * c_out)
        bytes_accessed += sum(int(t.size) * t.dtype.itemsize
                              for t in (a, inv_deg, w, b))
    bytes_accessed += n_last * c_pad * 4
    transcendentals = n_last * (c_pad + 1)
    cost = pl.CostEstimate(flops=int(flops), transcendentals=int(transcendentals),
                           bytes_accessed=int(bytes_accessed))

    kernel = functools.partial(_fused_sage_kernel, num_layers=num_layers,
                               out_channels=out_channels, tgt_rows=tgt_rows,
                               bf16_epilogue=bf16_epilogue)
    out_padded = pl.pallas_call(
        kernel,
        out_shape=jax.ShapeDtypeStruct((n_last, c_pad), jnp.float32),
        in_specs=in_specs,
        out_specs=_full_spec((n_last, c_pad)),
        cost_estimate=cost,
    )(*operands)
    return out_padded


# ----------------------------------------------------------------------------
# Glue (plain JAX): edge_index -> dense 0/1-count adjacency + inv-degree vector
# ----------------------------------------------------------------------------
def build_adj_and_inv_deg(edge_index, n_src_pad, n_tgt_pad):
    src = edge_index[0]
    tgt = edge_index[1]
    # dense counts (exact in bf16 while per-entry multiplicity <= 256)
    # TODO(synk): assert max edge multiplicity <= 256 for general multigraphs.
    a = jnp.zeros((n_tgt_pad, n_src_pad), jnp.float32).at[tgt, src].add(1.0)
    # O(E) segment-add for degrees (no dense row-sum pass)
    deg = jnp.zeros((n_tgt_pad, 1), jnp.float32).at[tgt, 0].add(1.0)
    inv_deg = jnp.where(deg > 0.0, 1.0 / jnp.maximum(deg, 1.0), 0.0)
    return a.astype(jnp.bfloat16), inv_deg


# ----------------------------------------------------------------------------
# SAGE model (parameters built deterministically in-script)
# ----------------------------------------------------------------------------
class SAGEPallas:
    def __init__(self, in_channels, hidden_channels, out_channels, num_layers,
                 dropout, aggr, key):
        assert aggr == "mean"
        self.num_layers = num_layers
        self.out_channels = out_channels
        self.dropout = dropout  # eval mode: dropout is identity
        dims = [in_channels] + [hidden_channels] * (num_layers - 1) + [out_channels]
        self.dims_pad = [_round_up(d, LANE) for d in dims]   # lane-dense channels
        self.params = []
        for i in range(num_layers):
            c_in, c_out = dims[i], dims[i + 1]
            c_in_pad, c_out_pad = self.dims_pad[i], self.dims_pad[i + 1]
            key, k1, k2, k3 = jax.random.split(key, 4)
            scale = 1.0 / jnp.sqrt(jnp.float32(c_in))
            w_l = jax.random.normal(k1, (c_in, c_out), jnp.float32) * scale  # lin_l (pre-T)
            w_r = jax.random.normal(k2, (c_in, c_out), jnp.float32) * scale  # lin_r (no bias)
            b = jax.random.normal(k3, (1, c_out), jnp.float32) * 0.01        # lin_l bias
            w_l = jnp.pad(w_l, ((0, c_in_pad - c_in), (0, c_out_pad - c_out)))
            w_r = jnp.pad(w_r, ((0, c_in_pad - c_in), (0, c_out_pad - c_out)))
            b = jnp.pad(b, ((0, 0), (0, c_out_pad - c_out)))
            # pack the two projections into one MXU pass: [agg | x_tgt] @ [W_l ; W_r]
            w_packed = jnp.concatenate([w_l, w_r], axis=0).astype(jnp.bfloat16)
            self.params.append((w_packed, b))                # bias stays f32

    def forward(self, x, adjs):
        num_layers = self.num_layers
        # node counts per level: level 0 = x rows, level i+1 = targets of layer i
        n_nodes = [adjs[0][2][0]] + [size[1] for (_, _, size) in adjs]
        # levels that feed an adjacency contraction must be 128-lane aligned;
        # the final target level only needs sublane alignment (f32 output).
        n_pad = []
        for lvl in range(len(n_nodes)):
            if lvl < num_layers:
                n_pad.append(_round_up(n_nodes[lvl], LANE))
            else:
                n_pad.append(_round_up(n_nodes[lvl], SUBLANE_F32))

        c0_pad = self.dims_pad[0]
        x_pad = jnp.zeros((n_pad[0], c0_pad), jnp.float32)
        x_pad = x_pad.at[:x.shape[0], :x.shape[1]].set(x.astype(jnp.float32))

        layers = []
        for i, (edge_index, _, size) in enumerate(adjs):
            adj, inv_deg = build_adj_and_inv_deg(edge_index, n_pad[i], n_pad[i + 1])
            w_packed, b = self.params[i]
            layers.append((adj, inv_deg, w_packed, b))
            # F.dropout(training=False) -> identity in eval mode.

        out_padded = sage_forward_fused(x_pad.astype(jnp.bfloat16), layers,
                                        self.out_channels,
                                        bf16_epilogue=_has_bf16_vpu())
        return out_padded[:n_nodes[-1], :self.out_channels]


# ----------------------------------------------------------------------------
if __name__ == "__main__":
    key = jax.random.PRNGKey(0)
    key, k_feat, k_e0s, k_e0t, k_e1s, k_e1t, k_model = jax.random.split(key, 7)

    in_channels, hidden_channels, out_channels = 32, 64, 16
    num_layers = 2

    # bipartite neighbor-sampler style sizes: 96 -> 48 -> 16
    n0, n1, n2 = 96, 48, 16
    e0, e1 = 300, 120

    x = jax.random.normal(k_feat, (n0, in_channels), jnp.float32)

    edge_index0 = jnp.stack([
        jax.random.randint(k_e0s, (e0,), 0, n0, jnp.int32),
        jax.random.randint(k_e0t, (e0,), 0, n1, jnp.int32),
    ])
    edge_index1 = jnp.stack([
        jax.random.randint(k_e1s, (e1,), 0, n1, jnp.int32),
        jax.random.randint(k_e1t, (e1,), 0, n2, jnp.int32),
    ])
    adjs = [
        (edge_index0, None, (n0, n1)),
        (edge_index1, None, (n1, n2)),
    ]

    model = SAGEPallas(in_channels, hidden_channels, out_channels,
                       num_layers, dropout=0.5, aggr="mean", key=k_model)

    out = model.forward(x, adjs)
    out = jax.block_until_ready(out)

    assert out.shape == (n2, out_channels)
    assert bool(jnp.all(jnp.isfinite(out)))
    # rows of log_softmax must sum (in prob space) to 1
    assert bool(jnp.allclose(jnp.sum(jnp.exp(out), axis=-1), 1.0, atol=1e-4))
    print("KERNEL_OK")
</pallas_src>

<mosaic_0001>
module attributes {stable_mosaic.version = 11 : i64} {
  func.func @_fused_sage_kernel(%arg0: memref<128x128xbf16, #tpu.memory_space<vmem>>, %arg1: memref<128x128xbf16, #tpu.memory_space<vmem>>, %arg2: memref<128x1xf32, #tpu.memory_space<vmem>>, %arg3: memref<256x128xbf16, #tpu.memory_space<vmem>>, %arg4: memref<1x128xf32, #tpu.memory_space<vmem>>, %arg5: memref<16x128xbf16, #tpu.memory_space<vmem>>, %arg6: memref<16x1xf32, #tpu.memory_space<vmem>>, %arg7: memref<256x128xbf16, #tpu.memory_space<vmem>>, %arg8: memref<1x128xf32, #tpu.memory_space<vmem>>, %arg9: memref<16x128xf32, #tpu.memory_space<vmem>>) attributes {dimension_semantics = [], scalar_prefetch = 0 : i64, scratch_operands = 0 : i64, tpu.core_type = #tpu.core_type<tc>} {
    %c0 = arith.constant 0 : index
    %c0_0 = arith.constant 0 : index
    %0 = vector.load %arg0[%c0, %c0_0] : memref<128x128xbf16, #tpu.memory_space<vmem>>, vector<128x128xbf16>
    %c0_1 = arith.constant 0 : index
    %c0_2 = arith.constant 0 : index
    %1 = vector.load %arg1[%c0_1, %c0_2] : memref<128x128xbf16, #tpu.memory_space<vmem>>, vector<128x128xbf16>
    %cst = arith.constant dense<0.000000e+00> : vector<128x128xf32>
    %2 = tpu.matmul %1, %0, %cst {dimension_numbers = #tpu.dot_dimension_numbers<[1], [0], [0], [1], [0, 0, 1, 1], [], []>} : vector<128x128xbf16>, vector<128x128xbf16>, vector<128x128xf32> -> vector<128x128xf32>
    %c0_3 = arith.constant 0 : index
    %c0_4 = arith.constant 0 : index
    %3 = vector.load %arg2[%c0_3, %c0_4] : memref<128x1xf32, #tpu.memory_space<vmem>>, vector<128x1xf32>
    %4 = vector.broadcast %3 : vector<128x1xf32> to vector<128x128xf32>
    %5 = arith.mulf %2, %4 : vector<128x128xf32>
    %6 = arith.truncf %5 : vector<128x128xf32> to vector<128x128xbf16>
    %7 = tpu.concatenate %6, %0 in 1 : vector<128x128xbf16>, vector<128x128xbf16> -> vector<128x256xbf16>
    %c0_5 = arith.constant 0 : index
    %c0_6 = arith.constant 0 : index
    %8 = vector.load %arg3[%c0_5, %c0_6] : memref<256x128xbf16, #tpu.memory_space<vmem>>, vector<256x128xbf16>
    %cst_7 = arith.constant dense<0.000000e+00> : vector<128x128xf32>
    %9 = tpu.matmul %7, %8, %cst_7 {dimension_numbers = #tpu.dot_dimension_numbers<[1], [0], [0], [1], [0, 0, 1, 1], [], []>} : vector<128x256xbf16>, vector<256x128xbf16>, vector<128x128xf32> -> vector<128x128xf32>
    %c0_8 = arith.constant 0 : index
    %c0_9 = arith.constant 0 : index
    %10 = vector.load %arg4[%c0_8, %c0_9] : memref<1x128xf32, #tpu.memory_space<vmem>>, vector<1x128xf32>
    %11 = vector.broadcast %10 : vector<1x128xf32> to vector<128x128xf32>
    %12 = arith.addf %9, %11 : vector<128x128xf32>
    %cst_10 = arith.constant 0.000000e+00 : f32
    %13 = vector.broadcast %cst_10 : f32 to vector<128x128xf32>
    %14 = arith.maximumf %12, %13 : vector<128x128xf32>
    %15 = arith.truncf %14 : vector<128x128xf32> to vector<128x128xbf16>
    %c0_11 = arith.constant 0 : index
    %c0_12 = arith.constant 0 : index
    %16 = vector.load %arg5[%c0_11, %c0_12] : memref<16x128xbf16, #tpu.memory_space<vmem>>, vector<16x128xbf16>
    %cst_13 = arith.constant dense<0.000000e+00> : vector<16x128xf32>
    %17 = tpu.matmul %16, %15, %cst_13 {dimension_numbers = #tpu.dot_dimension_numbers<[1], [0], [0], [1], [0, 0, 1, 1], [], []>} : vector<16x128xbf16>, vector<128x128xbf16>, vector<16x128xf32> -> vector<16x128xf32>
    %c0_14 = arith.constant 0 : index
    %c0_15 = arith.constant 0 : index
    %18 = vector.load %arg6[%c0_14, %c0_15] : memref<16x1xf32, #tpu.memory_space<vmem>>, vector<16x1xf32>
    %19 = vector.broadcast %18 : vector<16x1xf32> to vector<16x128xf32>
    %20 = arith.mulf %17, %19 : vector<16x128xf32>
    %21 = arith.truncf %20 : vector<16x128xf32> to vector<16x128xbf16>
    %22 = vector.extract_strided_slice %15 {offsets = [0, 0], sizes = [16, 128], strides = [1, 1]} : vector<128x128xbf16> to vector<16x128xbf16>
    %23 = tpu.concatenate %21, %22 in 1 : vector<16x128xbf16>, vector<16x128xbf16> -> vector<16x256xbf16>
    %c0_16 = arith.constant 0 : index
    %c0_17 = arith.constant 0 : index
    %24 = vector.load %arg7[%c0_16, %c0_17] : memref<256x128xbf16, #tpu.memory_space<vmem>>, vector<256x128xbf16>
    %cst_18 = arith.constant dense<0.000000e+00> : vector<16x128xf32>
    %25 = tpu.matmul %23, %24, %cst_18 {dimension_numbers = #tpu.dot_dimension_numbers<[1], [0], [0], [1], [0, 0, 1, 1], [], []>} : vector<16x256xbf16>, vector<256x128xbf16>, vector<16x128xf32> -> vector<16x128xf32>
    %c0_19 = arith.constant 0 : index
    %c0_20 = arith.constant 0 : index
    %26 = vector.load %arg8[%c0_19, %c0_20] : memref<1x128xf32, #tpu.memory_space<vmem>>, vector<1x128xf32>
    %27 = vector.broadcast %26 : vector<1x128xf32> to vector<16x128xf32>
    %28 = arith.addf %25, %27 : vector<16x128xf32>
    %29 = tpu.iota {dimensions = array<i32: 1>} : vector<16x128xi32>
    %c16_i32 = arith.constant 16 : i32
    %30 = vector.broadcast %c16_i32 : i32 to vector<16x128xi32>
    %31 = arith.cmpi slt, %29, %30 : vector<16x128xi32>
    %cst_21 = arith.constant -1.000000e+30 : f32
    %32 = vector.broadcast %cst_21 : f32 to vector<16x128xf32>
    %33 = arith.select %31, %28, %32 : vector<16x128xi1>, vector<16x128xf32>
    %cst_22 = arith.constant dense<0xFF800000> : vector<16xf32>
    %34 = vector.multi_reduction <maximumf>, %33, %cst_22 [1] : vector<16x128xf32> to vector<16xf32>
    %35 = vector.shape_cast %34 : vector<16xf32> to vector<16x1xf32>
    %36 = vector.broadcast %35 : vector<16x1xf32> to vector<16x128xf32>
    %37 = arith.subf %33, %36 : vector<16x128xf32>
    %38 = math.exp %37 : vector<16x128xf32>
    %cst_23 = arith.constant dense<0.000000e+00> : vector<16xf32>
    %39 = vector.multi_reduction <add>, %38, %cst_23 [1] : vector<16x128xf32> to vector<16xf32>
    %40 = vector.shape_cast %39 : vector<16xf32> to vector<16x1xf32>
    %41 = math.log %40 : vector<16x1xf32>
    %42 = vector.broadcast %41 : vector<16x1xf32> to vector<16x128xf32>
    %43 = arith.subf %37, %42 : vector<16x128xf32>
    %c0_24 = arith.constant 0 : index
    %c0_25 = arith.constant 0 : index
    %44 = vector.load %arg9[%c0_24, %c0_25] : memref<16x128xf32, #tpu.memory_space<vmem>>, vector<16x128xf32>
    tpu.vector_store %arg9[%c0_24, %c0_25], %43 {strides = array<i32>} : memref<16x128xf32, #tpu.memory_space<vmem>>, vector<16x128xf32>,
    return
  }
}

</mosaic_0001>

<llo_original>
// kernel: tpu_custom_call.1
$region0: #{tpu_custom_call.1}
  #allocation0 [shape = 'u32[]', space=smem, size = 0x4, offset = 0x4, fixed_abs, tag = 'smem constant byte address 0x4 - core index']
  #allocation1 [shape = 'u32[144,128]{1,0:T(1,128)}', space=vmem, size = 0x12000, scoped, tag = 'internal scratch']
  %s0 = inlined_call_operand.hbm [shape: bf16[128,128], index: 0, kind: input, shape index: {}]
  %s1 = inlined_call_operand.hbm [shape: bf16[128,128], index: 1, kind: input, shape index: {}]
  %s2 = inlined_call_operand.vmem [shape: f32[128,1], index: 2, kind: input, shape index: {}]
  %s3 = inlined_call_operand.vmem [shape: bf16[256,128], index: 3, kind: input, shape index: {}]
  %s4 = inlined_call_operand.vmem [shape: f32[1,128], index: 4, kind: input, shape index: {}]
  %s5 = inlined_call_operand.vmem [shape: bf16[16,128], index: 5, kind: input, shape index: {}]
  %s6 = inlined_call_operand.vmem [shape: f32[16,1], index: 6, kind: input, shape index: {}]
  %s7 = inlined_call_operand.hbm [shape: bf16[256,128], index: 7, kind: input, shape index: {}]
  %s8 = inlined_call_operand.vmem [shape: f32[1,128], index: 8, kind: input, shape index: {}]
  %s9 = inlined_call_operand.hbm [shape: f32[16,128], index: 9, kind: output, shape index: {}]
  %s10 = sld [smem:[#allocation0]]
  $region58: #{tpu_custom_call.1} parent=0
    _
  %s12 = ssub.s32 1, %s10
  %s13 = scalar_select 0, %s12, %s10
  $region1: #{tpu_custom_call.1} parent=0
    #allocation2 [shape = 'u8[32768]{0}', space=vmem, size = 0x8000, scoped, tag = 'input window, operand 0, single buffered']
    #allocation3 [shape = 's32[1]{0}', space=sflag, size = 0x4, scoped, tag = 'scoped memory for tpu_custom_call.1']
    #allocation4 [shape = 's32[1]{0}', space=sflag, size = 0x4, scoped, tag = 'scoped memory for tpu_custom_call.1']
    #allocation5 [shape = 'u8[32768]{0}', space=vmem, size = 0x8000, scoped, tag = 'input window, operand 1, single buffered']
    #allocation6 [shape = 's32[1]{0}', space=sflag, size = 0x4, scoped, tag = 'scoped memory for tpu_custom_call.1']
    #allocation7 [shape = 'u8[65536]{0}', space=vmem, size = 0x10000, scoped, tag = 'input window, operand 7, single buffered']
    #allocation8 [shape = 'u8[8192]{0}', space=vmem, size = 0x2000, scoped, tag = 'output window, operand 0, single buffered']
    %14 = vsyncpa [#allocation3], 0
    %15 = vsyncpa [#allocation6], 0
    %16 = vsyncpa [#allocation4], 0
    // Predicated region
    $region2: #{tpu_custom_call.1} parent=1 // pred_check
      _
    $region3: #{tpu_custom_call.1} parent=1 // pred_check_branch
      %18 = sbr.rel (0) target = $region5
    $region4: #{tpu_custom_call.1} parent=1 // pred_region
      %s20 = ssub.s32 1024, 1024
      %21 = vsyncadd [#allocation3], %s20
      %s22 = sshll.u32 [#allocation2], 4
      %s23 = int_to_ptr.vmem [resolvable:$true] %s22
      %28 = dma.hbm_to_vmem [thread:$0]  %s0, 1024, %s23, [#allocation3], 64, 64, 4
    $region5: #{tpu_custom_call.1} parent=1 // pred_fallthru
      _
    // Predicated region
    $region6: #{tpu_custom_call.1} parent=1 // pred_check
      _
    $region7: #{tpu_custom_call.1} parent=1 // pred_check_branch
      %30 = sbr.rel (0) target = $region9
    $region8: #{tpu_custom_call.1} parent=1 // pred_region
      %s32 = ssub.s32 1024, 1024
      %33 = vsyncadd [#allocation6], %s32
      %s34 = sshll.u32 [#allocation5], 4
      %s35 = int_to_ptr.vmem [resolvable:$true] %s34
      %40 = dma.hbm_to_vmem [thread:$0]  %s1, 1024, %s35, [#allocation6], 64, 64, 4
    $region9: #{tpu_custom_call.1} parent=1 // pred_fallthru
      _
    // Predicated region
    $region10: #{tpu_custom_call.1} parent=1 // pred_check
      _
    $region11: #{tpu_custom_call.1} parent=1 // pred_check_branch
      %42 = sbr.rel (0) target = $region13
    $region12: #{tpu_custom_call.1} parent=1 // pred_region
      _
    $region13: #{tpu_custom_call.1} parent=1 // pred_fallthru
      _
    // Predicated region
    $region14: #{tpu_custom_call.1} parent=1 // pred_check
      _
    $region15: #{tpu_custom_call.1} parent=1 // pred_check_branch
      %44 = sbr.rel (0) target = $region17
    $region16: #{tpu_custom_call.1} parent=1 // pred_region
      _
    $region17: #{tpu_custom_call.1} parent=1 // pred_fallthru
      _
    // Predicated region
    $region18: #{tpu_custom_call.1} parent=1 // pred_check
      _
    $region19: #{tpu_custom_call.1} parent=1 // pred_check_branch
      %46 = sbr.rel (0) target = $region21
    $region20: #{tpu_custom_call.1} parent=1 // pred_region
      _
    $region21: #{tpu_custom_call.1} parent=1 // pred_fallthru
      _
    // Predicated region
    $region22: #{tpu_custom_call.1} parent=1 // pred_check
      _
    $region23: #{tpu_custom_call.1} parent=1 // pred_check_branch
      %48 = sbr.rel (0) target = $region25
    $region24: #{tpu_custom_call.1} parent=1 // pred_region
      _
    $region25: #{tpu_custom_call.1} parent=1 // pred_fallthru
      _
    // Predicated region
    $region26: #{tpu_custom_call.1} parent=1 // pred_check
      _
    $region27: #{tpu_custom_call.1} parent=1 // pred_check_branch
      %50 = sbr.rel (0) target = $region29
    $region28: #{tpu_custom_call.1} parent=1 // pred_region
      _
    $region29: #{tpu_custom_call.1} parent=1 // pred_fallthru
      _
    // Predicated region
    $region30: #{tpu_custom_call.1} parent=1 // pred_check
      _
    $region31: #{tpu_custom_call.1} parent=1 // pred_check_branch
      %52 = sbr.rel (0) target = $region33
    $region32: #{tpu_custom_call.1} parent=1 // pred_region
      %s54 = ssub.s32 2048, 2048
      %55 = vsyncadd [#allocation6], %s54
      %s56 = sshll.u32 [#allocation7], 4
      %s57 = int_to_ptr.vmem [resolvable:$true] %s56
      %62 = dma.hbm_to_vmem [thread:$0]  %s7, 2048, %s57, [#allocation6], 64, 64, 4
    $region33: #{tpu_custom_call.1} parent=1 // pred_fallthru
      _
    // Predicated region
    $region34: #{tpu_custom_call.1} parent=1 // pred_check
      _
    $region35: #{tpu_custom_call.1} parent=1 // pred_check_branch
      %64 = sbr.rel (0) target = $region37
    $region36: #{tpu_custom_call.1} parent=1 // pred_region
      _
    $region37: #{tpu_custom_call.1} parent=1 // pred_fallthru
      _
    // Predicated region
    $region38: #{tpu_custom_call.1} parent=1 // pred_check
      _
    $region39: #{tpu_custom_call.1} parent=1 // pred_check_branch
      %66 = sbr.rel (0) target = $region41
    $region40: #{tpu_custom_call.1} parent=1 // pred_region
      %67 = dma.done [#allocation3], 1024
    $region41: #{tpu_custom_call.1} parent=1 // pred_fallthru
      _
    // Predicated region
    $region42: #{tpu_custom_call.1} parent=1 // pred_check
      _
    $region43: #{tpu_custom_call.1} parent=1 // pred_check_branch
      %69 = sbr.rel (0) target = $region45
    $region44: #{tpu_custom_call.1} parent=1 // pred_region
      %70 = dma.done [#allocation6], 1024
    $region45: #{tpu_custom_call.1} parent=1 // pred_fallthru
      _
    // Predicated region
    $region46: #{tpu_custom_call.1} parent=1 // pred_check
      _
    $region47: #{tpu_custom_call.1} parent=1 // pred_check_branch
      %72 = sbr.rel (0) target = $region49
    $region48: #{tpu_custom_call.1} parent=1 // pred_region
      %73 = dma.done [#allocation6], 2048
    $region49: #{tpu_custom_call.1} parent=1 // pred_fallthru
      _
    %v75 = vld [vmem:[#allocation2] sm:$0xf]
    %v76 = vld [vmem:[#allocation2 + $0x4] sm:$0xf]
    %v77 = vld [vmem:[#allocation2 + $0x8] sm:$0xf]
    %v78 = vld [vmem:[#allocation2 + $0xc] sm:$0xf]
    %v79 = vld [vmem:[#allocation2 + $0x10] sm:$0xf]
    %v80 = vld [vmem:[#allocation2 + $0x14] sm:$0xf]
    %v81 = vld [vmem:[#allocation2 + $0x18] sm:$0xf]
    %v82 = vld [vmem:[#allocation2 + $0x1c] sm:$0xf]
    %v83 = vld [vmem:[#allocation2 + $0x20] sm:$0xf]
    %v84 = vld [vmem:[#allocation2 + $0x24] sm:$0xf]
    %v85 = vld [vmem:[#allocation2 + $0x28] sm:$0xf]
    %v86 = vld [vmem:[#allocation2 + $0x2c] sm:$0xf]
    %v87 = vld [vmem:[#allocation2 + $0x30] sm:$0xf]
    %v88 = vld [vmem:[#allocation2 + $0x34] sm:$0xf]
    %v89 = vld [vmem:[#allocation2 + $0x38] sm:$0xf]
    %v90 = vld [vmem:[#allocation2 + $0x3c] sm:$0xf]
    %v91 = vld [vmem:[#allocation5] sm:$0xf]
    %v92 = vld [vmem:[#allocation5 + $0x4] sm:$0xf]
    %v93 = vld [vmem:[#allocation5 + $0x8] sm:$0xf]
    %v94 = vld [vmem:[#allocation5 + $0xc] sm:$0xf]
    %v95 = vld [vmem:[#allocation5 + $0x10] sm:$0xf]
    %v96 = vld [vmem:[#allocation5 + $0x14] sm:$0xf]
    %v97 = vld [vmem:[#allocation5 + $0x18] sm:$0xf]
    %v98 = vld [vmem:[#allocation5 + $0x1c] sm:$0xf]
    %v99 = vld [vmem:[#allocation5 + $0x20] sm:$0xf]
    %v100 = vld [vmem:[#allocation5 + $0x24] sm:$0xf]
    %v101 = vld [vmem:[#allocation5 + $0x28] sm:$0xf]
    %v102 = vld [vmem:[#allocation5 + $0x2c] sm:$0xf]
    %v103 = vld [vmem:[#allocation5 + $0x30] sm:$0xf]
    %v104 = vld [vmem:[#allocation5 + $0x34] sm:$0xf]
    %v105 = vld [vmem:[#allocation5 + $0x38] sm:$0xf]
    %v106 = vld [vmem:[#allocation5 + $0x3c] sm:$0xf]
    %v123 = vunpack.c.l.b16 %v91
    %v124 = vunpack.c.l.b16 %v92
    %v125 = vunpack.c.l.b16 %v93
    %v126 = vunpack.c.l.b16 %v94
    %v127 = vunpack.c.l.b16 %v95
    %v128 = vunpack.c.l.b16 %v96
    %v129 = vunpack.c.l.b16 %v97
    %v130 = vunpack.c.l.b16 %v98
    %v131 = vunpack.c.l.b16 %v99
    %v132 = vunpack.c.l.b16 %v100
    %v133 = vunpack.c.l.b16 %v101
    %v134 = vunpack.c.l.b16 %v102
    %v135 = vunpack.c.l.b16 %v103
    %v136 = vunpack.c.l.b16 %v104
    %v137 = vunpack.c.l.b16 %v105
    %v138 = vunpack.c.l.b16 %v106
    %v139 = vpack.c.b16 %v124, %v123
    %v140 = vpack.c.b16 %v126, %v125
    %v141 = vpack.c.b16 %v128, %v127
    %v142 = vpack.c.b16 %v130, %v129
    %v143 = vpack.c.b16 %v132, %v131
    %v144 = vpack.c.b16 %v134, %v133
    %v145 = vpack.c.b16 %v136, %v135
    %v146 = vpack.c.b16 %v138, %v137
    %v171 = vunpack.c.l.b16 %v75
    %v172 = vunpack.c.l.b16 %v76
    %v173 = vunpack.c.l.b16 %v77
    %v174 = vunpack.c.l.b16 %v78
    %v175 = vunpack.c.l.b16 %v79
    %v176 = vunpack.c.l.b16 %v80
    %v177 = vunpack.c.l.b16 %v81
    %v178 = vunpack.c.l.b16 %v82
    %v179 = vunpack.c.l.b16 %v83
    %v180 = vunpack.c.l.b16 %v84
    %v181 = vunpack.c.l.b16 %v85
    %v182 = vunpack.c.l.b16 %v86
    %v183 = vunpack.c.l.b16 %v87
    %v184 = vunpack.c.l.b16 %v88
    %v185 = vunpack.c.l.b16 %v89
    %v186 = vunpack.c.l.b16 %v90
    %v187 = vpack.c.b16 %v172, %v171
    %v188 = vpack.c.b16 %v174, %v173
    %v189 = vpack.c.b16 %v176, %v175
    %v190 = vpack.c.b16 %v178, %v177
    %v191 = vpack.c.b16 %v180, %v179
    %v192 = vpack.c.b16 %v182, %v181
    %v193 = vpack.c.b16 %v184, %v183
    %v194 = vpack.c.b16 %v186, %v185
    %203 = vmatprep.subr.bf16.mxu0 0
    %204 = vmatpush1.bf16.msra.mxu0 %v187
    %205 = vmatprep.subr.bf16.mxu0 0
    %206 = vmatpush1.bf16.msra.mxu0 %v188
    %207 = vmatprep.subr.bf16.mxu0 0
    %208 = vmatpush1.bf16.msra.mxu0 %v189
    %209 = vmatprep.subr.bf16.mxu0 0
    %210 = vmatpush1.bf16.msra.mxu0 %v190
    %211 = vmatprep.subr.bf16.mxu0 0
    %212 = vmatpush1.bf16.msra.mxu0 %v191
    %213 = vmatprep.subr.bf16.mxu0 0
    %214 = vmatpush1.bf16.msra.mxu0 %v192
    %215 = vmatprep.subr.bf16.mxu0 0
    %216 = vmatpush1.bf16.msra.mxu0 %v193
    %217 = vmatprep.subr.bf16.mxu0 0
    %218 = vmatpush1.bf16.msra.mxu0 %v194
    %219 = vmatprep.subr.bf16.mxu0 0
    %220 = vmatpush1.bf16.msra.mxu0 0
    %221 = vmatprep.subr.bf16.mxu0 0
    %222 = vmatpush1.bf16.msra.mxu0 0
    %223 = vmatprep.subr.bf16.mxu0 0
    %224 = vmatpush1.bf16.msra.mxu0 0
    %225 = vmatprep.subr.bf16.mxu0 0
    %226 = vmatpush1.bf16.msra.mxu0 0
    %227 = vmatprep.subr.bf16.mxu0 0
    %228 = vmatpush1.bf16.msra.mxu0 0
    %229 = vmatprep.subr.bf16.mxu0 0
    %230 = vmatpush1.bf16.msra.mxu0 0
    %231 = vmatprep.subr.bf16.mxu0 0
    %232 = vmatpush1.bf16.msra.mxu0 0
    %233 = vmatprep.subr.bf16.mxu0 0
    %234 = vmatpush1.bf16.msra.mxu0 0
    %235 = vmatprep.mubr.bf16.mxu0 0
    %236 = vmatmul.mubr.bf16.gmra.mrb[0].mxu0 %v139
    %v237 = vpop.f32.mrb[0].mxu0
    %v238 = vadd.f32 0.0, %v237
    %v239 = vpop.f32.mrb[0].mxu0
    %v240 = vpop.f32.mrb[0].mxu0
    %v241 = vadd.f32 0.0, %v240
    %v242 = vpop.f32.mrb[0].mxu0
    %243 = vmatprep.mubr.bf16.mxu0 0
    %244 = vmatmul.mubr.bf16.gmra.mrb[0].mxu0 %v140
    %v245 = vpop.f32.mrb[0].mxu0
    %v246 = vadd.f32 0.0, %v245
    %v247 = vpop.f32.mrb[0].mxu0
    %v248 = vpop.f32.mrb[0].mxu0
    %v249 = vadd.f32 0.0, %v248
    %v250 = vpop.f32.mrb[0].mxu0
    %251 = vmatprep.mubr.bf16.mxu0 0
    %252 = vmatmul.mubr.bf16.gmra.mrb[0].mxu0 %v141
    %v253 = vpop.f32.mrb[0].mxu0
    %v254 = vadd.f32 0.0, %v253
    %v255 = vpop.f32.mrb[0].mxu0
    %v256 = vpop.f32.mrb[0].mxu0
    %v257 = vadd.f32 0.0, %v256
    %v258 = vpop.f32.mrb[0].mxu0
    %259 = vmatprep.mubr.bf16.mxu0 0
    %260 = vmatmul.mubr.bf16.gmra.mrb[0].mxu0 %v142
    %v261 = vpop.f32.mrb[0].mxu0
    %v262 = vadd.f32 0.0, %v261
    %v263 = vpop.f32.mrb[0].mxu0
    %v264 = vpop.f32.mrb[0].mxu0
    %v265 = vadd.f32 0.0, %v264
    %v266 = vpop.f32.mrb[0].mxu0
    %267 = vmatprep.mubr.bf16.mxu0 0
    %268 = vmatmul.mubr.bf16.gmra.mrb[0].mxu0 %v143
    %v269 = vpop.f32.mrb[0].mxu0
    %v270 = vadd.f32 0.0, %v269
    %v271 = vpop.f32.mrb[0].mxu0
    %v272 = vpop.f32.mrb[0].mxu0
    %v273 = vadd.f32 0.0, %v272
    %v274 = vpop.f32.mrb[0].mxu0
    %275 = vmatprep.mubr.bf16.mxu0 0
    %276 = vmatmul.mubr.bf16.gmra.mrb[0].mxu0 %v144
    %v277 = vpop.f32.mrb[0].mxu0
    %v278 = vadd.f32 0.0, %v277
    %v279 = vpop.f32.mrb[0].mxu0
    %v280 = vpop.f32.mrb[0].mxu0
    %v281 = vadd.f32 0.0, %v280
    %v282 = vpop.f32.mrb[0].mxu0
    %283 = vmatprep.mubr.bf16.mxu0 0
    %284 = vmatmul.mubr.bf16.gmra.mrb[0].mxu0 %v145
    %v285 = vpop.f32.mrb[0].mxu0
    %v286 = vadd.f32 0.0, %v285
    %v287 = vpop.f32.mrb[0].mxu0
    %v288 = vpop.f32.mrb[0].mxu0
    %v289 = vadd.f32 0.0, %v288
    %v290 = vpop.f32.mrb[0].mxu0
    %291 = vmatprep.mubr.bf16.mxu0 0
    %292 = vmatmul.mubr.bf16.gmra.mrb[0].mxu0 %v146
    %v293 = vpop.f32.mrb[0].mxu0
    %v294 = vadd.f32 0.0, %v293
    %v295 = vpop.f32.mrb[0].mxu0
    %v296 = vpop.f32.mrb[0].mxu0
    %v297 = vadd.f32 0.0, %v296
    %v298 = vpop.f32.mrb[0].mxu0
    %299 = vdwg.mxu0
    %v300 = vld [vmem:[%s2] sm:$0xff]
    %v301 = vld [vmem:[%s2 + $0x8] sm:$0xff]
    %v302 = vld [vmem:[%s2 + $0x10] sm:$0xff]
    %v303 = vld [vmem:[%s2 + $0x18] sm:$0xff]
    %v304 = vld [vmem:[%s2 + $0x20] sm:$0xff]
    %v305 = vld [vmem:[%s2 + $0x28] sm:$0xff]
    %v306 = vld [vmem:[%s2 + $0x30] sm:$0xff]
    %v307 = vld [vmem:[%s2 + $0x38] sm:$0xff]
    %v308 = vld [vmem:[%s2 + $0x40] sm:$0xff]
    %v309 = vld [vmem:[%s2 + $0x48] sm:$0xff]
    %v310 = vld [vmem:[%s2 + $0x50] sm:$0xff]
    %v311 = vld [vmem:[%s2 + $0x58] sm:$0xff]
    %v312 = vld [vmem:[%s2 + $0x60] sm:$0xff]
    %v313 = vld [vmem:[%s2 + $0x68] sm:$0xff]
    %v314 = vld [vmem:[%s2 + $0x70] sm:$0xff]
    %v315 = vld [vmem:[%s2 + $0x78] sm:$0xff]
    %317 = vset.pattern.permute.xlu0 0
    %318 = vperm.xlu0 %317, %v300
    %v319 = vpop.permute.xlu0 %318
    %322 = vset.pattern.permute.xlu0 0
    %323 = vperm.xlu0 %322, %v301
    %v324 = vpop.permute.xlu0 %323
    %327 = vset.pattern.permute.xlu0 0
    %328 = vperm.xlu0 %327, %v302
    %v329 = vpop.permute.xlu0 %328
    %332 = vset.pattern.permute.xlu0 0
    %333 = vperm.xlu0 %332, %v303
    %v334 = vpop.permute.xlu0 %333
    %337 = vset.pattern.permute.xlu0 0
    %338 = vperm.xlu0 %337, %v304
    %v339 = vpop.permute.xlu0 %338
    %342 = vset.pattern.permute.xlu0 0
    %343 = vperm.xlu0 %342, %v305
    %v344 = vpop.permute.xlu0 %343
    %347 = vset.pattern.permute.xlu0 0
    %348 = vperm.xlu0 %347, %v306
    %v349 = vpop.permute.xlu0 %348
    %352 = vset.pattern.permute.xlu0 0
    %353 = vperm.xlu0 %352, %v307
    %v354 = vpop.permute.xlu0 %353
    %357 = vset.pattern.permute.xlu0 0
    %358 = vperm.xlu0 %357, %v308
    %v359 = vpop.permute.xlu0 %358
    %362 = vset.pattern.permute.xlu0 0
    %363 = vperm.xlu0 %362, %v309
    %v364 = vpop.permute.xlu0 %363
    %367 = vset.pattern.permute.xlu0 0
    %368 = vperm.xlu0 %367, %v310
    %v369 = vpop.permute.xlu0 %368
    %372 = vset.pattern.permute.xlu0 0
    %373 = vperm.xlu0 %372, %v311
    %v374 = vpop.permute.xlu0 %373
    %377 = vset.pattern.permute.xlu0 0
    %378 = vperm.xlu0 %377, %v312
    %v379 = vpop.permute.xlu0 %378
    %382 = vset.pattern.permute.xlu0 0
    %383 = vperm.xlu0 %382, %v313
    %v384 = vpop.permute.xlu0 %383
    %387 = vset.pattern.permute.xlu0 0
    %388 = vperm.xlu0 %387, %v314
    %v389 = vpop.permute.xlu0 %388
    %392 = vset.pattern.permute.xlu0 0
    %393 = vperm.xlu0 %392, %v315
    %v394 = vpop.permute.xlu0 %393
    %v396 = vmul.f32 %v238, %v319
    %v397 = vmul.f32 %v241, %v324
    %v398 = vmul.f32 %v246, %v329
    %v399 = vmul.f32 %v249, %v334
    %v400 = vmul.f32 %v254, %v339
    %v401 = vmul.f32 %v257, %v344
    %v402 = vmul.f32 %v262, %v349
    %v403 = vmul.f32 %v265, %v354
    %v404 = vmul.f32 %v270, %v359
    %v405 = vmul.f32 %v273, %v364
    %v406 = vmul.f32 %v278, %v369
    %v407 = vmul.f32 %v281, %v374
    %v408 = vmul.f32 %v286, %v379
    %v409 = vmul.f32 %v289, %v384
    %v410 = vmul.f32 %v294, %v389
    %v411 = vmul.f32 %v297, %v394
    %v412 = vpack.c.bf16 %v397, %v396
    %v413 = vpack.c.bf16 %v399, %v398
    %v414 = vpack.c.bf16 %v401, %v400
    %v415 = vpack.c.bf16 %v403, %v402
    %v416 = vpack.c.bf16 %v405, %v404
    %v417 = vpack.c.bf16 %v407, %v406
    %v418 = vpack.c.bf16 %v409, %v408
    %v419 = vpack.c.bf16 %v411, %v410
    %v420 = vld [vmem:[%s3] sm:$0xf]
    %v421 = vld [vmem:[%s3 + $0x4] sm:$0xf]
    %v422 = vld [vmem:[%s3 + $0x8] sm:$0xf]
    %v423 = vld [vmem:[%s3 + $0xc] sm:$0xf]
    %v424 = vld [vmem:[%s3 + $0x10] sm:$0xf]
    %v425 = vld [vmem:[%s3 + $0x14] sm:$0xf]
    %v426 = vld [vmem:[%s3 + $0x18] sm:$0xf]
    %v427 = vld [vmem:[%s3 + $0x1c] sm:$0xf]
    %v428 = vld [vmem:[%s3 + $0x20] sm:$0xf]
    %v429 = vld [vmem:[%s3 + $0x24] sm:$0xf]
    %v430 = vld [vmem:[%s3 + $0x28] sm:$0xf]
    %v431 = vld [vmem:[%s3 + $0x2c] sm:$0xf]
    %v432 = vld [vmem:[%s3 + $0x30] sm:$0xf]
    %v433 = vld [vmem:[%s3 + $0x34] sm:$0xf]
    %v434 = vld [vmem:[%s3 + $0x38] sm:$0xf]
    %v435 = vld [vmem:[%s3 + $0x3c] sm:$0xf]
    %v436 = vld [vmem:[%s3 + $0x40] sm:$0xf]
    %v437 = vld [vmem:[%s3 + $0x44] sm:$0xf]
    %v438 = vld [vmem:[%s3 + $0x48] sm:$0xf]
    %v439 = vld [vmem:[%s3 + $0x4c] sm:$0xf]
    %v440 = vld [vmem:[%s3 + $0x50] sm:$0xf]
    %v441 = vld [vmem:[%s3 + $0x54] sm:$0xf]
    %v442 = vld [vmem:[%s3 + $0x58] sm:$0xf]
    %v443 = vld [vmem:[%s3 + $0x5c] sm:$0xf]
    %v444 = vld [vmem:[%s3 + $0x60] sm:$0xf]
    %v445 = vld [vmem:[%s3 + $0x64] sm:$0xf]
    %v446 = vld [vmem:[%s3 + $0x68] sm:$0xf]
    %v447 = vld [vmem:[%s3 + $0x6c] sm:$0xf]
    %v448 = vld [vmem:[%s3 + $0x70] sm:$0xf]
    %v449 = vld [vmem:[%s3 + $0x74] sm:$0xf]
    %v450 = vld [vmem:[%s3 + $0x78] sm:$0xf]
    %v451 = vld [vmem:[%s3 + $0x7c] sm:$0xf]
    %v452 = vld [vmem:[%s4] sm:$0x1]
    %v454 = vlaneseq
    %v455 = vshrl.u32 %v454, 7
    %v456 = vsub.s32 0, %v455
    %v457 = vrot.slane %v452, %v456
    %v491 = vunpack.c.l.b16 %v420
    %v492 = vunpack.c.l.b16 %v421
    %v493 = vunpack.c.l.b16 %v422
    %v494 = vunpack.c.l.b16 %v423
    %v495 = vunpack.c.l.b16 %v424
    %v496 = vunpack.c.l.b16 %v425
    %v497 = vunpack.c.l.b16 %v426
    %v498 = vunpack.c.l.b16 %v427
    %v499 = vunpack.c.l.b16 %v428
    %v500 = vunpack.c.l.b16 %v429
    %v501 = vunpack.c.l.b16 %v430
    %v502 = vunpack.c.l.b16 %v431
    %v503 = vunpack.c.l.b16 %v432
    %v504 = vunpack.c.l.b16 %v433
    %v505 = vunpack.c.l.b16 %v434
    %v506 = vunpack.c.l.b16 %v435
    %v507 = vunpack.c.l.b16 %v436
    %v508 = vunpack.c.l.b16 %v437
    %v509 = vunpack.c.l.b16 %v438
    %v510 = vunpack.c.l.b16 %v439
    %v511 = vunpack.c.l.b16 %v440
    %v512 = vunpack.c.l.b16 %v441
    %v513 = vunpack.c.l.b16 %v442
    %v514 = vunpack.c.l.b16 %v443
    %v515 = vunpack.c.l.b16 %v444
    %v516 = vunpack.c.l.b16 %v445
    %v517 = vunpack.c.l.b16 %v446
    %v518 = vunpack.c.l.b16 %v447
    %v519 = vunpack.c.l.b16 %v448
    %v520 = vunpack.c.l.b16 %v449
    %v521 = vunpack.c.l.b16 %v450
    %v522 = vunpack.c.l.b16 %v451
    %v523 = vpack.c.b16 %v492, %v491
    %v524 = vpack.c.b16 %v494, %v493
    %v525 = vpack.c.b16 %v496, %v495
    %v526 = vpack.c.b16 %v498, %v497
    %v527 = vpack.c.b16 %v500, %v499
    %v528 = vpack.c.b16 %v502, %v501
    %v529 = vpack.c.b16 %v504, %v503
    %v530 = vpack.c.b16 %v506, %v505
    %v531 = vpack.c.b16 %v508, %v507
    %v532 = vpack.c.b16 %v510, %v509
    %v533 = vpack.c.b16 %v512, %v511
    %v534 = vpack.c.b16 %v514, %v513
    %v535 = vpack.c.b16 %v516, %v515
    %v536 = vpack.c.b16 %v518, %v517
    %v537 = vpack.c.b16 %v520, %v519
    %v538 = vpack.c.b16 %v522, %v521
    %555 = vmatprep.subr.bf16.mxu0 0
    %556 = vmatpush1.bf16.msra.mxu0 %v523
    %557 = vmatprep.subr.bf16.mxu0 0
    %558 = vmatpush1.bf16.msra.mxu0 %v524
    %559 = vmatprep.subr.bf16.mxu0 0
    %560 = vmatpush1.bf16.msra.mxu0 %v525
    %561 = vmatprep.subr.bf16.mxu0 0
    %562 = vmatpush1.bf16.msra.mxu0 %v526
    %563 = vmatprep.subr.bf16.mxu0 0
    %564 = vmatpush1.bf16.msra.mxu0 %v527
    %565 = vmatprep.subr.bf16.mxu0 0
    %566 = vmatpush1.bf16.msra.mxu0 %v528
    %567 = vmatprep.subr.bf16.mxu0 0
    %568 = vmatpush1.bf16.msra.mxu0 %v529
    %569 = vmatprep.subr.bf16.mxu0 0
    %570 = vmatpush1.bf16.msra.mxu0 %v530
    %571 = vmatprep.subr.bf16.mxu0 0
    %572 = vmatpush1.bf16.msra.mxu0 %v531
    %573 = vmatprep.subr.bf16.mxu0 0
    %574 = vmatpush1.bf16.msra.mxu0 %v532
    %575 = vmatprep.subr.bf16.mxu0 0
    %576 = vmatpush1.bf16.msra.mxu0 %v533
    %577 = vmatprep.subr.bf16.mxu0 0
    %578 = vmatpush1.bf16.msra.mxu0 %v534
    %579 = vmatprep.subr.bf16.mxu0 0
    %580 = vmatpush1.bf16.msra.mxu0 %v535
    %581 = vmatprep.subr.bf16.mxu0 0
    %582 = vmatpush1.bf16.msra.mxu0 %v536
    %583 = vmatprep.subr.bf16.mxu0 0
    %584 = vmatpush1.bf16.msra.mxu0 %v537
    %585 = vmatprep.subr.bf16.mxu0 0
    %586 = vmatpush1.bf16.msra.mxu0 %v538
    %587 = vmatprep.mubr.bf16.mxu0 %v187
    %588 = vmatmul.mubr.bf16.gmra.mrb[0].mxu0 %v412
    %v589 = vpop.f32.mrb[0].mxu0
    %v590 = vadd.f32 %v457, %v589
    %v591 = vpop.f32.mrb[0].mxu0
    %v592 = vpop.f32.mrb[0].mxu0
    %v593 = vadd.f32 %v457, %v592
    %v594 = vpop.f32.mrb[0].mxu0
    %595 = vmatprep.mubr.bf16.mxu0 %v188
    %596 = vmatmul.mubr.bf16.gmra.mrb[0].mxu0 %v413
    %v597 = vpop.f32.mrb[0].mxu0
    %v598 = vadd.f32 %v457, %v597
    %v599 = vpop.f32.mrb[0].mxu0
    %v600 = vpop.f32.mrb[0].mxu0
    %v601 = vadd.f32 %v457, %v600
    %v602 = vpop.f32.mrb[0].mxu0
    %603 = vmatprep.mubr.bf16.mxu0 %v189
    %604 = vmatmul.mubr.bf16.gmra.mrb[0].mxu0 %v414
    %v605 = vpop.f32.mrb[0].mxu0
    %v606 = vadd.f32 %v457, %v605
    %v607 = vpop.f32.mrb[0].mxu0
    %v608 = vpop.f32.mrb[0].mxu0
    %v609 = vadd.f32 %v457, %v608
    %v610 = vpop.f32.mrb[0].mxu0
    %611 = vmatprep.mubr.bf16.mxu0 %v190
    %612 = vmatmul.mubr.bf16.gmra.mrb[0].mxu0 %v415
    %v613 = vpop.f32.mrb[0].mxu0
    %v614 = vadd.f32 %v457, %v613
    %v615 = vpop.f32.mrb[0].mxu0
    %v616 = vpop.f32.mrb[0].mxu0
    %v617 = vadd.f32 %v457, %v616
    %v618 = vpop.f32.mrb[0].mxu0
    %619 = vmatprep.mubr.bf16.mxu0 %v191
    %620 = vmatmul.mubr.bf16.gmra.mrb[0].mxu0 %v416
    %v621 = vpop.f32.mrb[0].mxu0
    %v622 = vadd.f32 %v457, %v621
    %v623 = vpop.f32.mrb[0].mxu0
    %v624 = vpop.f32.mrb[0].mxu0
    %v625 = vadd.f32 %v457, %v624
    %v626 = vpop.f32.mrb[0].mxu0
    %627 = vmatprep.mubr.bf16.mxu0 %v192
    %628 = vmatmul.mubr.bf16.gmra.mrb[0].mxu0 %v417
    %v629 = vpop.f32.mrb[0].mxu0
    %v630 = vadd.f32 %v457, %v629
    %v631 = vpop.f32.mrb[0].mxu0
    %v632 = vpop.f32.mrb[0].mxu0
    %v633 = vadd.f32 %v457, %v632
    %v634 = vpop.f32.mrb[0].mxu0
    %635 = vmatprep.mubr.bf16.mxu0 %v193
    %636 = vmatmul.mubr.bf16.gmra.mrb[0].mxu0 %v418
    %v637 = vpop.f32.mrb[0].mxu0
    %v638 = vadd.f32 %v457, %v637
    %v639 = vpop.f32.mrb[0].mxu0
    %v640 = vpop.f32.mrb[0].mxu0
    %v641 = vadd.f32 %v457, %v640
    %v642 = vpop.f32.mrb[0].mxu0
    %643 = vmatprep.mubr.bf16.mxu0 %v194
    %644 = vmatmul.mubr.bf16.gmra.mrb[0].mxu0 %v419
    %v645 = vpop.f32.mrb[0].mxu0
    %v646 = vadd.f32 %v457, %v645
    %v647 = vpop.f32.mrb[0].mxu0
    %v648 = vpop.f32.mrb[0].mxu0
    %v649 = vadd.f32 %v457, %v648
    %v650 = vpop.f32.mrb[0].mxu0
    %651 = vdwg.mxu0
    %v652 = vmax.f32 %v590, 0.0
    %v653 = vmax.f32 %v593, 0.0
    %v654 = vmax.f32 %v598, 0.0
    %v655 = vmax.f32 %v601, 0.0
    %v656 = vmax.f32 %v606, 0.0
    %v657 = vmax.f32 %v609, 0.0
    %v658 = vmax.f32 %v614, 0.0
    %v659 = vmax.f32 %v617, 0.0
    %v660 = vmax.f32 %v622, 0.0
    %v661 = vmax.f32 %v625, 0.0
    %v662 = vmax.f32 %v630, 0.0
    %v663 = vmax.f32 %v633, 0.0
    %v664 = vmax.f32 %v638, 0.0
    %v665 = vmax.f32 %v641, 0.0
    %v666 = vmax.f32 %v646, 0.0
    %v667 = vmax.f32 %v649, 0.0
    %v668 = vpack.c.bf16 %v653, %v652
    %v669 = vpack.c.bf16 %v655, %v654
    %v670 = vpack.c.bf16 %v657, %v656
    %v671 = vpack.c.bf16 %v659, %v658
    %v672 = vpack.c.bf16 %v661, %v660
    %v673 = vpack.c.bf16 %v663, %v662
    %v674 = vpack.c.bf16 %v665, %v664
    %v675 = vpack.c.bf16 %v667, %v666
    %v676 = vld [vmem:[%s5] sm:$0xf]
    %v677 = vld [vmem:[%s5 + $0x4] sm:$0xf]
    %v680 = vunpack.c.l.b16 %v676
    %v681 = vunpack.c.l.b16 %v677
    %v682 = vpack.c.b16 %v681, %v680
    %684 = vmatprep.subr.bf16.mxu0 0
    %685 = vmatpush1.bf16.msra.mxu0 %v668
    %686 = vmatprep.subr.bf16.mxu0 0
    %687 = vmatpush1.bf16.msra.mxu0 %v669
    %688 = vmatprep.subr.bf16.mxu0 0
    %689 = vmatpush1.bf16.msra.mxu0 %v670
    %690 = vmatprep.subr.bf16.mxu0 0
    %691 = vmatpush1.bf16.msra.mxu0 %v671
    %692 = vmatprep.subr.bf16.mxu0 0
    %693 = vmatpush1.bf16.msra.mxu0 %v672
    %694 = vmatprep.subr.bf16.mxu0 0
    %695 = vmatpush1.bf16.msra.mxu0 %v673
    %696 = vmatprep.subr.bf16.mxu0 0
    %697 = vmatpush1.bf16.msra.mxu0 %v674
    %698 = vmatprep.subr.bf16.mxu0 0
    %699 = vmatpush1.bf16.msra.mxu0 %v675
    %700 = vmatprep.subr.bf16.mxu0 0
    %701 = vmatpush1.bf16.msra.mxu0 0
    %702 = vmatprep.subr.bf16.mxu0 0
    %703 = vmatpush1.bf16.msra.mxu0 0
    %704 = vmatprep.subr.bf16.mxu0 0
    %705 = vmatpush1.bf16.msra.mxu0 0
    %706 = vmatprep.subr.bf16.mxu0 0
    %707 = vmatpush1.bf16.msra.mxu0 0
    %708 = vmatprep.subr.bf16.mxu0 0
    %709 = vmatpush1.bf16.msra.mxu0 0
    %710 = vmatprep.subr.bf16.mxu0 0
    %711 = vmatpush1.bf16.msra.mxu0 0
    %712 = vmatprep.subr.bf16.mxu0 0
    %713 = vmatpush1.bf16.msra.mxu0 0
    %714 = vmatprep.subr.bf16.mxu0 0
    %715 = vmatpush1.bf16.msra.mxu0 0
    %716 = vmatprep.mubr.bf16.mxu0 0
    %717 = vmatmul.mubr.bf16.gmra.mrb[0].mxu0 %v682
    %v718 = vpop.f32.mrb[0].mxu0
    %v719 = vadd.f32 0.0, %v718
    %v720 = vpop.f32.mrb[0].mxu0
    %v721 = vpop.f32.mrb[0].mxu0
    %v722 = vadd.f32 0.0, %v721
    %v723 = vpop.f32.mrb[0].mxu0
    %724 = vdwg.mxu0
    %v725 = vld [vmem:[%s6] sm:$0xff]
    %v726 = vld [vmem:[%s6 + $0x8] sm:$0xff]
    %728 = vset.pattern.permute.xlu0 0
    %729 = vperm.xlu0 %728, %v725
    %v730 = vpop.permute.xlu0 %729
    %733 = vset.pattern.permute.xlu0 0
    %734 = vperm.xlu0 %733, %v726
    %v735 = vpop.permute.xlu0 %734
    %v737 = vmul.f32 %v719, %v730
    %v738 = vmul.f32 %v722, %v735
    %v739 = vpack.c.bf16 %v738, %v737
    %v740 = vld [vmem:[#allocation7] sm:$0xf]
    %v741 = vld [vmem:[#allocation7 + $0x4] sm:$0xf]
    %v742 = vld [vmem:[#allocation7 + $0x8] sm:$0xf]
    %v743 = vld [vmem:[#allocation7 + $0xc] sm:$0xf]
    %v744 = vld [vmem:[#allocation7 + $0x10] sm:$0xf]
    %v745 = vld [vmem:[#allocation7 + $0x14] sm:$0xf]
    %v746 = vld [vmem:[#allocation7 + $0x18] sm:$0xf]
    %v747 = vld [vmem:[#allocation7 + $0x1c] sm:$0xf]
    %v748 = vld [vmem:[#allocation7 + $0x20] sm:$0xf]
    %v749 = vld [vmem:[#allocation7 + $0x24] sm:$0xf]
    %v750 = vld [vmem:[#allocation7 + $0x28] sm:$0xf]
    %v751 = vld [vmem:[#allocation7 + $0x2c] sm:$0xf]
    %v752 = vld [vmem:[#allocation7 + $0x30] sm:$0xf]
    %v753 = vld [vmem:[#allocation7 + $0x34] sm:$0xf]
    %v754 = vld [vmem:[#allocation7 + $0x38] sm:$0xf]
    %v755 = vld [vmem:[#allocation7 + $0x3c] sm:$0xf]
    %v756 = vld [vmem:[#allocation7 + $0x40] sm:$0xf]
    %v757 = vld [vmem:[#allocation7 + $0x44] sm:$0xf]
    %v758 = vld [vmem:[#allocation7 + $0x48] sm:$0xf]
    %v759 = vld [vmem:[#allocation7 + $0x4c] sm:$0xf]
    %v760 = vld [vmem:[#allocation7 + $0x50] sm:$0xf]
    %v761 = vld [vmem:[#allocation7 + $0x54] sm:$0xf]
    %v762 = vld [vmem:[#allocation7 + $0x58] sm:$0xf]
    %v763 = vld [vmem:[#allocation7 + $0x5c] sm:$0xf]
    %v764 = vld [vmem:[#allocation7 + $0x60] sm:$0xf]
    %v765 = vld [vmem:[#allocation7 + $0x64] sm:$0xf]
    %v766 = vld [vmem:[#allocation7 + $0x68] sm:$0xf]
    %v767 = vld [vmem:[#allocation7 + $0x6c] sm:$0xf]
    %v768 = vld [vmem:[#allocation7 + $0x70] sm:$0xf]
    %v769 = vld [vmem:[#allocation7 + $0x74] sm:$0xf]
    %v770 = vld [vmem:[#allocation7 + $0x78] sm:$0xf]
    %v771 = vld [vmem:[#allocation7 + $0x7c] sm:$0xf]
    %v772 = vld [vmem:[%s8] sm:$0x1]
    %v774 = vlaneseq
    %v775 = vshrl.u32 %v774, 7
    %v776 = vsub.s32 0, %v775
    %v777 = vrot.slane %v772, %v776
    %v811 = vunpack.c.l.b16 %v740
    %v812 = vunpack.c.l.b16 %v741
    %v813 = vunpack.c.l.b16 %v742
    %v814 = vunpack.c.l.b16 %v743
    %v815 = vunpack.c.l.b16 %v744
    %v816 = vunpack.c.l.b16 %v745
    %v817 = vunpack.c.l.b16 %v746
    %v818 = vunpack.c.l.b16 %v747
    %v819 = vunpack.c.l.b16 %v748
    %v820 = vunpack.c.l.b16 %v749
    %v821 = vunpack.c.l.b16 %v750
    %v822 = vunpack.c.l.b16 %v751
    %v823 = vunpack.c.l.b16 %v752
    %v824 = vunpack.c.l.b16 %v753
    %v825 = vunpack.c.l.b16 %v754
    %v826 = vunpack.c.l.b16 %v755
    %v827 = vunpack.c.l.b16 %v756
    %v828 = vunpack.c.l.b16 %v757
    %v829 = vunpack.c.l.b16 %v758
    %v830 = vunpack.c.l.b16 %v759
    %v831 = vunpack.c.l.b16 %v760
    %v832 = vunpack.c.l.b16 %v761
    %v833 = vunpack.c.l.b16 %v762
    %v834 = vunpack.c.l.b16 %v763
    %v835 = vunpack.c.l.b16 %v764
    %v836 = vunpack.c.l.b16 %v765
    %v837 = vunpack.c.l.b16 %v766
    %v838 = vunpack.c.l.b16 %v767
    %v839 = vunpack.c.l.b16 %v768
    %v840 = vunpack.c.l.b16 %v769
    %v841 = vunpack.c.l.b16 %v770
    %v842 = vunpack.c.l.b16 %v771
    %v843 = vpack.c.b16 %v812, %v811
    %v844 = vpack.c.b16 %v814, %v813
    %v845 = vpack.c.b16 %v816, %v815
    %v846 = vpack.c.b16 %v818, %v817
    %v847 = vpack.c.b16 %v820, %v819
    %v848 = vpack.c.b16 %v822, %v821
    %v849 = vpack.c.b16 %v824, %v823
    %v850 = vpack.c.b16 %v826, %v825
    %v851 = vpack.c.b16 %v828, %v827
    %v852 = vpack.c.b16 %v830, %v829
    %v853 = vpack.c.b16 %v832, %v831
    %v854 = vpack.c.b16 %v834, %v833
    %v855 = vpack.c.b16 %v836, %v835
    %v856 = vpack.c.b16 %v838, %v837
    %v857 = vpack.c.b16 %v840, %v839
    %v858 = vpack.c.b16 %v842, %v841
    %875 = vmatprep.subr.bf16.mxu0 0
    %876 = vmatpush1.bf16.msra.mxu0 %v843
    %877 = vmatprep.subr.bf16.mxu0 0
    %878 = vmatpush1.bf16.msra.mxu0 %v844
    %879 = vmatprep.subr.bf16.mxu0 0
    %880 = vmatpush1.bf16.msra.mxu0 %v845
    %881 = vmatprep.subr.bf16.mxu0 0
    %882 = vmatpush1.bf16.msra.mxu0 %v846
    %883 = vmatprep.subr.bf16.mxu0 0
    %884 = vmatpush1.bf16.msra.mxu0 %v847
    %885 = vmatprep.subr.bf16.mxu0 0
    %886 = vmatpush1.bf16.msra.mxu0 %v848
    %887 = vmatprep.subr.bf16.mxu0 0
    %888 = vmatpush1.bf16.msra.mxu0 %v849
    %889 = vmatprep.subr.bf16.mxu0 0
    %890 = vmatpush1.bf16.msra.mxu0 %v850
    %891 = vmatprep.subr.bf16.mxu0 0
    %892 = vmatpush1.bf16.msra.mxu0 %v851
    %893 = vmatprep.subr.bf16.mxu0 0
    %894 = vmatpush1.bf16.msra.mxu0 %v852
    %895 = vmatprep.subr.bf16.mxu0 0
    %896 = vmatpush1.bf16.msra.mxu0 %v853
    %897 = vmatprep.subr.bf16.mxu0 0
    %898 = vmatpush1.bf16.msra.mxu0 %v854
    %899 = vmatprep.subr.bf16.mxu0 0
    %900 = vmatpush1.bf16.msra.mxu0 %v855
    %901 = vmatprep.subr.bf16.mxu0 0
    %902 = vmatpush1.bf16.msra.mxu0 %v856
    %903 = vmatprep.subr.bf16.mxu0 0
    %904 = vmatpush1.bf16.msra.mxu0 %v857
    %905 = vmatprep.subr.bf16.mxu0 0
    %906 = vmatpush1.bf16.msra.mxu0 %v858
    %907 = vmatprep.mubr.bf16.mxu0 %v668
    %908 = vmatmul.mubr.bf16.gmra.mrb[0].mxu0 %v739
    %v909 = vpop.f32.mrb[0].mxu0
    %v910 = vadd.f32 %v777, %v909
    %v911 = vpop.f32.mrb[0].mxu0
    %v912 = vpop.f32.mrb[0].mxu0
    %v913 = vadd.f32 %v777, %v912
    %v914 = vpop.f32.mrb[0].mxu0
    %915 = vdwg.mxu0
    %v916 = vlaneseq
    %v917 = vand.u32 %v916, 127
    %vm918 = vcmp.lt.s32.totalorder %v917, 16
    %v919 = vsel %vm918, %v910, -1e+30
    %v920 = vsel %vm918, %v913, -1e+30
    %921 = vmax.xlane.f32.xlu0 %v919
    %v922 = vpop.xlane.xlu0 %921
    %923 = vmax.xlane.f32.xlu0 %v920
    %v924 = vpop.xlane.xlu0 %923
    %v925 = vsub.f32 %v919, %v922
    %v926 = vsub.f32 %v920, %v924
    %v927 = vmul.f32 %v925, 1.442695
    %v928 = vpow.pop %v927
    %v929 = vmul.f32 %v926, 1.442695
    %v930 = vpow.pop %v929
    %931 = vadd.xlane.f32.xlu0 %v928
    %v932 = vpop.xlane.xlu0 %931
    %933 = vadd.xlane.f32.xlu0 %v930
    %v934 = vpop.xlane.xlu0 %933
    %v935 = vlog2.pop %v932
    %v936 = vmul.f32 %v935, 0.6931472
    %v937 = vlog2.pop %v934
    %v938 = vmul.f32 %v937, 0.6931472
    %v939 = vsub.f32 %v925, %v936
    %v940 = vsub.f32 %v926, %v938
    %941 = vst [vmem:[#allocation8] sm:$0xff] %v939
    %942 = vst [vmem:[#allocation8 + $0x8] sm:$0xff] %v940
    // Predicated region
    $region50: #{tpu_custom_call.1} parent=1 // pred_check
      _
    $region51: #{tpu_custom_call.1} parent=1 // pred_check_branch
      %944 = sbr.rel (0) target = $region53
    $region52: #{tpu_custom_call.1} parent=1 // pred_region
      %s946 = ssub.s32 256, 256
      %947 = vsyncadd [#allocation4], %s946
      %s948 = sshll.u32 [#allocation8], 4
      %s949 = int_to_ptr.vmem [resolvable:$true] %s948
      %954 = dma.vmem_to_hbm [thread:$0]  %s949, 256, %s9, [#allocation4], 128, 128, 8
    $region53: #{tpu_custom_call.1} parent=1 // pred_fallthru
      _
    // Predicated region
    $region54: #{tpu_custom_call.1} parent=1 // pred_check
      _
    $region55: #{tpu_custom_call.1} parent=1 // pred_check_branch
      %956 = sbr.rel (0) target = $region57
    $region56: #{tpu_custom_call.1} parent=1 // pred_region
      %957 = dma.done [#allocation4], 256
    $region57: #{tpu_custom_call.1} parent=1 // pred_fallthru
      _
    %958 = vsyncpa [#allocation3], 1
    %959 = vsyncpa [#allocation6], 1
    %960 = vsyncpa [#allocation4], 1

</llo_original>
